<compile_context>
chip_gen: v6e
topology: v6e:2x2x1
jax: 0.10.0
libtpu: 0.0.40
codegen_flags: <defaults>
</compile_context>

<pallas_src>
import functools

import numpy as np
import jax
import jax.numpy as jnp
from jax.experimental import pallas as pl
from jax.experimental.pallas import tpu as pltpu  # noqa: F401  (kept for TPU-backend clarity)

_BN_EPS = 1e-5


def _bn_tanh(y, gb_ref):
    """tanh(BatchNorm1d_train(y)); gb_ref packs [gamma; beta] as a (2, D) ref."""
    mean = jnp.mean(y, axis=0, keepdims=True)                   # (1, D) sublane reduce
    centered = y - mean
    var = jnp.mean(centered * centered, axis=0, keepdims=True)  # biased variance
    y_hat = centered * jax.lax.rsqrt(var + _BN_EPS)
    gb = gb_ref[...]                                            # (2, D)
    return jnp.tanh(y_hat * gb[0:1, :] + gb[1:2, :])


def _make_fused_kernel(num_modalities):
    """Fused kernel: all unimodal Linear+BN+tanh stages + fusion stage + output stage."""

    def kernel(*refs):
        x_refs = refs[:num_modalities]
        w_uni_refs = refs[num_modalities:2 * num_modalities]
        (gb_uni_ref, w_fuse_ref, gb_fuse_ref,
         w_out_ref, gb_out_ref, o_ref) = refs[2 * num_modalities:]

        # Unimodal stage: block-diagonal matmul written as a sum of per-modality
        # matmuls (each weight slab has zeros outside its own column block), so
        # the result equals concat_m(x_m @ W_m^T) without any concatenate.
        z = jnp.dot(x_refs[0][...], w_uni_refs[0][...],
                    preferred_element_type=jnp.float32)
        for m in range(1, num_modalities):
            z = z + jnp.dot(x_refs[m][...], w_uni_refs[m][...],
                            preferred_element_type=jnp.float32)
        z = _bn_tanh(z, gb_uni_ref)                              # (N, fusion_in)

        # Fusion stage.
        f = _bn_tanh(jnp.dot(z, w_fuse_ref[...],
                             preferred_element_type=jnp.float32),
                     gb_fuse_ref)                                # (N, fusion_out)

        # Output stage (lane-dense padded width); single HBM write of the run.
        o_ref[...] = _bn_tanh(jnp.dot(f, w_out_ref[...],
                                      preferred_element_type=jnp.float32),
                              gb_out_ref)

    return kernel


@functools.partial(jax.jit, static_argnames=("output_size",))
def _fused_forward(xs, w_unis, gb_uni, w_fuse, gb_fuse, w_out, gb_out, *, output_size):
    num_modalities = len(xs)
    n = xs[0].shape[0]
    out_pad = w_out.shape[1]
    out = pl.pallas_call(
        _make_fused_kernel(num_modalities),
        out_shape=jax.ShapeDtypeStruct((n, out_pad), jnp.float32),
        # No grid / BlockSpecs: single program, whole arrays resident in VMEM.
    )(*xs, *w_unis, gb_uni, w_fuse, gb_fuse, w_out, gb_out)
    return out[:, :output_size]


class MultiModalEmbeddingLayerPallas:
    """JAX/Pallas re-implementation of MultiModalEmbeddingLayer (training-mode BN path)."""

    def __init__(self, node_type, input_sizes_dict, output_size, dropout_multimodal, key):
        assert dropout_multimodal == 0.0, "deterministic forward requires dropout p=0"
        if not isinstance(input_sizes_dict, dict) or not (1 <= len(input_sizes_dict) <= 3):
            raise ValueError("Currently only 1 to 3 modalities are supported.")
        self.node_type = node_type
        self.input_sizes_dict = dict(input_sizes_dict)
        self.modality_names = list(input_sizes_dict.keys())
        self.num_modalities = len(self.modality_names)
        self.output_size = int(output_size)

        # Mirrors get_output_size().
        self.uni_output_sizes = [int(np.floor(self.input_sizes_dict[m] / 2))
                                 for m in self.modality_names]
        self.fusion_input_size = int(sum(self.uni_output_sizes))
        self.fusion_output_size = int(np.floor(self.fusion_input_size / 2))

        def make_linear(k, d_in, d_out):
            # PyTorch nn.Linear default init: U(-1/sqrt(fan_in), 1/sqrt(fan_in)).
            kw, kb = jax.random.split(k)
            bound = 1.0 / np.sqrt(d_in)
            w_t = jax.random.uniform(kw, (d_in, d_out), jnp.float32, -bound, bound)
            b = jax.random.uniform(kb, (1, d_out), jnp.float32, -bound, bound)
            return w_t, b

        def gb(d):
            # Packed BatchNorm affine params [gamma; beta] (PyTorch default: 1 / 0).
            return jnp.concatenate([jnp.ones((1, d), jnp.float32),
                                    jnp.zeros((1, d), jnp.float32)], axis=0)

        keys = jax.random.split(key, self.num_modalities + 2)

        # Raw PyTorch-layout parameters (kept for fidelity + reference check).
        self.uni_raw = {}
        for i, m in enumerate(self.modality_names):
            self.uni_raw[m] = make_linear(keys[i], self.input_sizes_dict[m],
                                          self.uni_output_sizes[i])
        self.fuse_raw = make_linear(keys[-2], self.fusion_input_size, self.fusion_output_size)
        self.out_raw = make_linear(keys[-1], self.fusion_output_size, self.output_size)

        # ---- Kernel-layout parameters ----
        # Per-modality slab of the block-diagonal unimodal weight:
        # (Din_m, fusion_input_size) with W_m^T in its own column block, zeros elsewhere.
        # Biases are dropped: they cancel exactly under training-mode BN mean subtraction.
        w_uni_kernel = []
        off = 0
        for i, m in enumerate(self.modality_names):
            d_in = self.input_sizes_dict[m]
            d_out = self.uni_output_sizes[i]
            w_t, _b = self.uni_raw[m]
            slab = jnp.zeros((d_in, self.fusion_input_size), jnp.float32)
            slab = slab.at[:, off:off + d_out].set(w_t)
            w_uni_kernel.append(slab)
            off += d_out
        self.w_uni_kernel = tuple(w_uni_kernel)
        self.gb_uni = gb(self.fusion_input_size)

        self.w_fuse_kernel = self.fuse_raw[0]
        self.gb_fuse = gb(self.fusion_output_size)

        # Output stage padded up to a lane-dense (multiple of 128) width.
        self.out_pad = int(-(-self.output_size // 128) * 128)
        w_out_t, _b_out = self.out_raw
        w_out_pad = jnp.zeros((self.fusion_output_size, self.out_pad), jnp.float32)
        self.w_out_kernel = w_out_pad.at[:, :self.output_size].set(w_out_t)
        self.gb_out = gb(self.out_pad)

    def __call__(self, h):
        if not (1 <= len(h) <= 3):
            raise ValueError("Currently only 1 to 3 modalities are supported.")
        if list(h.keys()) != self.modality_names:
            raise ValueError(
                f"h must contain exactly the configured modalities in order {self.modality_names}")
        xs = []
        n = None
        for m in self.modality_names:
            x = h[m]
            if x.shape[0] == 1:
                # TODO(synk): InstanceNorm1d single-sample branch not implemented.
                raise NotImplementedError("batch size 1 (InstanceNorm path) unsupported")
            n = x.shape[0] if n is None else n
            assert x.shape == (n, self.input_sizes_dict[m]), (m, x.shape)
            xs.append(x.astype(jnp.float32))
        return _fused_forward(tuple(xs), self.w_uni_kernel, self.gb_uni,
                              self.w_fuse_kernel, self.gb_fuse,
                              self.w_out_kernel, self.gb_out,
                              output_size=self.output_size)


def _reference_forward(model, h):
    """Pure-jnp reproduction of the PyTorch training-mode forward (biases included)."""
    def bn_tanh(y):  # gamma=1, beta=0 (default BatchNorm1d affine init)
        mean = jnp.mean(y, axis=0, keepdims=True)
        var = jnp.mean((y - mean) ** 2, axis=0, keepdims=True)
        return jnp.tanh((y - mean) / jnp.sqrt(var + _BN_EPS))

    feats = []
    for m in model.modality_names:
        w_t, b = model.uni_raw[m]
        feats.append(bn_tanh(h[m] @ w_t + b))
    z = jnp.concatenate(feats, axis=1) if len(feats) > 1 else feats[0]
    w_t, b = model.fuse_raw
    f = bn_tanh(z @ w_t + b)
    w_t, b = model.out_raw
    return bn_tanh(f @ w_t + b)


if __name__ == "__main__":
    key = jax.random.PRNGKey(0)
    k_params, k_a, k_b, k_c = jax.random.split(key, 4)

    # Small deterministic example: 3 modalities, batch = 8.
    input_sizes = {"expr": 32, "cnv": 48, "mut": 16}
    output_size = 32
    N = 8

    model = MultiModalEmbeddingLayerPallas(
        node_type="gene",
        input_sizes_dict=input_sizes,
        output_size=output_size,
        dropout_multimodal=0.0,
        key=k_params,
    )

    h = {
        "expr": jax.random.normal(k_a, (N, input_sizes["expr"]), jnp.float32),
        "cnv": jax.random.normal(k_b, (N, input_sizes["cnv"]), jnp.float32),
        "mut": jax.random.normal(k_c, (N, input_sizes["mut"]), jnp.float32),
    }

    out = jax.block_until_ready(model(h))
    assert out.shape == (N, output_size), out.shape
    assert out.dtype == jnp.float32
    assert bool(jnp.all(jnp.isfinite(out)))

    # Correctness vs a pure-jnp reference of the PyTorch forward (reference keeps
    # the Linear biases; they cancel exactly under training-mode BatchNorm).
    # Loose tolerance only absorbs MXU-vs-XLA default matmul-precision noise;
    # any structural bug (wrong block offset, missing BN, etc.) gives O(1) error.
    ref = jax.block_until_ready(_reference_forward(model, h))
    max_diff = float(jnp.max(jnp.abs(out - ref)))
    assert max_diff < 1e-1, f"mismatch vs reference: max abs diff = {max_diff}"

    print("KERNEL_OK")
</pallas_src>

<mosaic_0001>
module attributes {stable_mosaic.version = 11 : i64} {
  func.func @kernel(%arg0: memref<8x32xf32, #tpu.memory_space<vmem>>, %arg1: memref<8x48xf32, #tpu.memory_space<vmem>>, %arg2: memref<8x16xf32, #tpu.memory_space<vmem>>, %arg3: memref<32x48xf32, #tpu.memory_space<vmem>>, %arg4: memref<48x48xf32, #tpu.memory_space<vmem>>, %arg5: memref<16x48xf32, #tpu.memory_space<vmem>>, %arg6: memref<2x48xf32, #tpu.memory_space<vmem>>, %arg7: memref<48x24xf32, #tpu.memory_space<vmem>>, %arg8: memref<2x24xf32, #tpu.memory_space<vmem>>, %arg9: memref<24x128xf32, #tpu.memory_space<vmem>>, %arg10: memref<2x128xf32, #tpu.memory_space<vmem>>, %arg11: memref<8x128xf32, #tpu.memory_space<vmem>>) attributes {dimension_semantics = [], scalar_prefetch = 0 : i64, scratch_operands = 0 : i64, tpu.core_type = #tpu.core_type<tc>} {
    %c0 = arith.constant 0 : index
    %c0_0 = arith.constant 0 : index
    %0 = vector.load %arg0[%c0, %c0_0] : memref<8x32xf32, #tpu.memory_space<vmem>>, vector<8x32xf32>
    %c0_1 = arith.constant 0 : index
    %c0_2 = arith.constant 0 : index
    %1 = vector.load %arg3[%c0_1, %c0_2] : memref<32x48xf32, #tpu.memory_space<vmem>>, vector<32x48xf32>
    %cst = arith.constant dense<0.000000e+00> : vector<8x48xf32>
    %2 = tpu.matmul %0, %1, %cst {dimension_numbers = #tpu.dot_dimension_numbers<[1], [0], [0], [1], [0, 0, 1, 1], [], []>} : vector<8x32xf32>, vector<32x48xf32>, vector<8x48xf32> -> vector<8x48xf32>
    %c0_3 = arith.constant 0 : index
    %c0_4 = arith.constant 0 : index
    %3 = vector.load %arg1[%c0_3, %c0_4] : memref<8x48xf32, #tpu.memory_space<vmem>>, vector<8x48xf32>
    %c0_5 = arith.constant 0 : index
    %c0_6 = arith.constant 0 : index
    %4 = vector.load %arg4[%c0_5, %c0_6] : memref<48x48xf32, #tpu.memory_space<vmem>>, vector<48x48xf32>
    %cst_7 = arith.constant dense<0.000000e+00> : vector<8x48xf32>
    %5 = tpu.matmul %3, %4, %cst_7 {dimension_numbers = #tpu.dot_dimension_numbers<[1], [0], [0], [1], [0, 0, 1, 1], [], []>} : vector<8x48xf32>, vector<48x48xf32>, vector<8x48xf32> -> vector<8x48xf32>
    %6 = arith.addf %2, %5 : vector<8x48xf32>
    %c0_8 = arith.constant 0 : index
    %c0_9 = arith.constant 0 : index
    %7 = vector.load %arg2[%c0_8, %c0_9] : memref<8x16xf32, #tpu.memory_space<vmem>>, vector<8x16xf32>
    %c0_10 = arith.constant 0 : index
    %c0_11 = arith.constant 0 : index
    %8 = vector.load %arg5[%c0_10, %c0_11] : memref<16x48xf32, #tpu.memory_space<vmem>>, vector<16x48xf32>
    %cst_12 = arith.constant dense<0.000000e+00> : vector<8x48xf32>
    %9 = tpu.matmul %7, %8, %cst_12 {dimension_numbers = #tpu.dot_dimension_numbers<[1], [0], [0], [1], [0, 0, 1, 1], [], []>} : vector<8x16xf32>, vector<16x48xf32>, vector<8x48xf32> -> vector<8x48xf32>
    %10 = arith.addf %6, %9 : vector<8x48xf32>
    %cst_13 = arith.constant dense<0.000000e+00> : vector<48xf32>
    %11 = vector.multi_reduction <add>, %10, %cst_13 [0] : vector<8x48xf32> to vector<48xf32>
    %12 = vector.shape_cast %11 : vector<48xf32> to vector<1x48xf32>
    %cst_14 = arith.constant 8.000000e+00 : f32
    %13 = vector.broadcast %cst_14 : f32 to vector<1x48xf32>
    %14 = arith.divf %12, %13 : vector<1x48xf32>
    %15 = vector.broadcast %14 : vector<1x48xf32> to vector<8x48xf32>
    %16 = arith.subf %10, %15 : vector<8x48xf32>
    %17 = arith.mulf %16, %16 : vector<8x48xf32>
    %cst_15 = arith.constant dense<0.000000e+00> : vector<48xf32>
    %18 = vector.multi_reduction <add>, %17, %cst_15 [0] : vector<8x48xf32> to vector<48xf32>
    %19 = vector.shape_cast %18 : vector<48xf32> to vector<1x48xf32>
    %cst_16 = arith.constant 8.000000e+00 : f32
    %20 = vector.broadcast %cst_16 : f32 to vector<1x48xf32>
    %21 = arith.divf %19, %20 : vector<1x48xf32>
    %cst_17 = arith.constant 9.99999974E-6 : f32
    %22 = vector.broadcast %cst_17 : f32 to vector<1x48xf32>
    %23 = arith.addf %21, %22 : vector<1x48xf32>
    %24 = math.rsqrt %23 : vector<1x48xf32>
    %25 = vector.broadcast %24 : vector<1x48xf32> to vector<8x48xf32>
    %26 = arith.mulf %16, %25 : vector<8x48xf32>
    %c0_18 = arith.constant 0 : index
    %c0_19 = arith.constant 0 : index
    %27 = vector.load %arg6[%c0_18, %c0_19] : memref<2x48xf32, #tpu.memory_space<vmem>>, vector<2x48xf32>
    %28 = vector.extract_strided_slice %27 {offsets = [0, 0], sizes = [1, 48], strides = [1, 1]} : vector<2x48xf32> to vector<1x48xf32>
    %29 = vector.broadcast %28 : vector<1x48xf32> to vector<8x48xf32>
    %30 = arith.mulf %26, %29 : vector<8x48xf32>
    %31 = vector.extract_strided_slice %27 {offsets = [1, 0], sizes = [1, 48], strides = [1, 1]} : vector<2x48xf32> to vector<1x48xf32>
    %32 = vector.broadcast %31 : vector<1x48xf32> to vector<8x48xf32>
    %33 = arith.addf %30, %32 : vector<8x48xf32>
    %34 = math.tanh %33 : vector<8x48xf32>
    %c0_20 = arith.constant 0 : index
    %c0_21 = arith.constant 0 : index
    %35 = vector.load %arg7[%c0_20, %c0_21] : memref<48x24xf32, #tpu.memory_space<vmem>>, vector<48x24xf32>
    %cst_22 = arith.constant dense<0.000000e+00> : vector<8x24xf32>
    %36 = tpu.matmul %34, %35, %cst_22 {dimension_numbers = #tpu.dot_dimension_numbers<[1], [0], [0], [1], [0, 0, 1, 1], [], []>} : vector<8x48xf32>, vector<48x24xf32>, vector<8x24xf32> -> vector<8x24xf32>
    %cst_23 = arith.constant dense<0.000000e+00> : vector<24xf32>
    %37 = vector.multi_reduction <add>, %36, %cst_23 [0] : vector<8x24xf32> to vector<24xf32>
    %38 = vector.shape_cast %37 : vector<24xf32> to vector<1x24xf32>
    %cst_24 = arith.constant 8.000000e+00 : f32
    %39 = vector.broadcast %cst_24 : f32 to vector<1x24xf32>
    %40 = arith.divf %38, %39 : vector<1x24xf32>
    %41 = vector.broadcast %40 : vector<1x24xf32> to vector<8x24xf32>
    %42 = arith.subf %36, %41 : vector<8x24xf32>
    %43 = arith.mulf %42, %42 : vector<8x24xf32>
    %cst_25 = arith.constant dense<0.000000e+00> : vector<24xf32>
    %44 = vector.multi_reduction <add>, %43, %cst_25 [0] : vector<8x24xf32> to vector<24xf32>
    %45 = vector.shape_cast %44 : vector<24xf32> to vector<1x24xf32>
    %cst_26 = arith.constant 8.000000e+00 : f32
    %46 = vector.broadcast %cst_26 : f32 to vector<1x24xf32>
    %47 = arith.divf %45, %46 : vector<1x24xf32>
    %cst_27 = arith.constant 9.99999974E-6 : f32
    %48 = vector.broadcast %cst_27 : f32 to vector<1x24xf32>
    %49 = arith.addf %47, %48 : vector<1x24xf32>
    %50 = math.rsqrt %49 : vector<1x24xf32>
    %51 = vector.broadcast %50 : vector<1x24xf32> to vector<8x24xf32>
    %52 = arith.mulf %42, %51 : vector<8x24xf32>
    %c0_28 = arith.constant 0 : index
    %c0_29 = arith.constant 0 : index
    %53 = vector.load %arg8[%c0_28, %c0_29] : memref<2x24xf32, #tpu.memory_space<vmem>>, vector<2x24xf32>
    %54 = vector.extract_strided_slice %53 {offsets = [0, 0], sizes = [1, 24], strides = [1, 1]} : vector<2x24xf32> to vector<1x24xf32>
    %55 = vector.broadcast %54 : vector<1x24xf32> to vector<8x24xf32>
    %56 = arith.mulf %52, %55 : vector<8x24xf32>
    %57 = vector.extract_strided_slice %53 {offsets = [1, 0], sizes = [1, 24], strides = [1, 1]} : vector<2x24xf32> to vector<1x24xf32>
    %58 = vector.broadcast %57 : vector<1x24xf32> to vector<8x24xf32>
    %59 = arith.addf %56, %58 : vector<8x24xf32>
    %60 = math.tanh %59 : vector<8x24xf32>
    %c0_30 = arith.constant 0 : index
    %c0_31 = arith.constant 0 : index
    %61 = vector.load %arg9[%c0_30, %c0_31] : memref<24x128xf32, #tpu.memory_space<vmem>>, vector<24x128xf32>
    %cst_32 = arith.constant dense<0.000000e+00> : vector<8x128xf32>
    %62 = tpu.matmul %60, %61, %cst_32 {dimension_numbers = #tpu.dot_dimension_numbers<[1], [0], [0], [1], [0, 0, 1, 1], [], []>} : vector<8x24xf32>, vector<24x128xf32>, vector<8x128xf32> -> vector<8x128xf32>
    %cst_33 = arith.constant dense<0.000000e+00> : vector<128xf32>
    %63 = vector.multi_reduction <add>, %62, %cst_33 [0] : vector<8x128xf32> to vector<128xf32>
    %64 = vector.shape_cast %63 : vector<128xf32> to vector<1x128xf32>
    %cst_34 = arith.constant 8.000000e+00 : f32
    %65 = vector.broadcast %cst_34 : f32 to vector<1x128xf32>
    %66 = arith.divf %64, %65 : vector<1x128xf32>
    %67 = vector.broadcast %66 : vector<1x128xf32> to vector<8x128xf32>
    %68 = arith.subf %62, %67 : vector<8x128xf32>
    %69 = arith.mulf %68, %68 : vector<8x128xf32>
    %cst_35 = arith.constant dense<0.000000e+00> : vector<128xf32>
    %70 = vector.multi_reduction <add>, %69, %cst_35 [0] : vector<8x128xf32> to vector<128xf32>
    %71 = vector.shape_cast %70 : vector<128xf32> to vector<1x128xf32>
    %cst_36 = arith.constant 8.000000e+00 : f32
    %72 = vector.broadcast %cst_36 : f32 to vector<1x128xf32>
    %73 = arith.divf %71, %72 : vector<1x128xf32>
    %cst_37 = arith.constant 9.99999974E-6 : f32
    %74 = vector.broadcast %cst_37 : f32 to vector<1x128xf32>
    %75 = arith.addf %73, %74 : vector<1x128xf32>
    %76 = math.rsqrt %75 : vector<1x128xf32>
    %77 = vector.broadcast %76 : vector<1x128xf32> to vector<8x128xf32>
    %78 = arith.mulf %68, %77 : vector<8x128xf32>
    %c0_38 = arith.constant 0 : index
    %c0_39 = arith.constant 0 : index
    %79 = vector.load %arg10[%c0_38, %c0_39] : memref<2x128xf32, #tpu.memory_space<vmem>>, vector<2x128xf32>
    %80 = vector.extract_strided_slice %79 {offsets = [0, 0], sizes = [1, 128], strides = [1, 1]} : vector<2x128xf32> to vector<1x128xf32>
    %81 = vector.broadcast %80 : vector<1x128xf32> to vector<8x128xf32>
    %82 = arith.mulf %78, %81 : vector<8x128xf32>
    %83 = vector.extract_strided_slice %79 {offsets = [1, 0], sizes = [1, 128], strides = [1, 1]} : vector<2x128xf32> to vector<1x128xf32>
    %84 = vector.broadcast %83 : vector<1x128xf32> to vector<8x128xf32>
    %85 = arith.addf %82, %84 : vector<8x128xf32>
    %86 = math.tanh %85 : vector<8x128xf32>
    %c0_40 = arith.constant 0 : index
    %c0_41 = arith.constant 0 : index
    %87 = vector.load %arg11[%c0_40, %c0_41] : memref<8x128xf32, #tpu.memory_space<vmem>>, vector<8x128xf32>
    tpu.vector_store %arg11[%c0_40, %c0_41], %86 {strides = array<i32>} : memref<8x128xf32, #tpu.memory_space<vmem>>, vector<8x128xf32>,
    return
  }
}

</mosaic_0001>

<llo_original>
// kernel: _fused_forward.1
$region0: #{_fused_forward.1}
  #allocation0 [shape = 'u32[]', space=smem, size = 0x4, offset = 0x4, fixed_abs, tag = 'smem constant byte address 0x4 - core index']
  #allocation1 [shape = 'u32[144,128]{1,0:T(1,128)}', space=vmem, size = 0x12000, scoped, tag = 'internal scratch']
  %s0 = inlined_call_operand.hbm [shape: f32[8,32], index: 0, kind: input, shape index: {}]
  %s1 = inlined_call_operand.hbm [shape: f32[8,48], index: 1, kind: input, shape index: {}]
  %s2 = inlined_call_operand.hbm [shape: f32[8,16], index: 2, kind: input, shape index: {}]
  %s3 = inlined_call_operand.hbm [shape: f32[32,48], index: 3, kind: input, shape index: {}]
  %s4 = inlined_call_operand.vmem [shape: f32[48,48], index: 4, kind: input, shape index: {}]
  %s5 = inlined_call_operand.hbm [shape: f32[16,48], index: 5, kind: input, shape index: {}]
  %s6 = inlined_call_operand.vmem [shape: f32[2,48], index: 6, kind: input, shape index: {}]
  %s7 = inlined_call_operand.vmem [shape: f32[48,24], index: 7, kind: input, shape index: {}]
  %s8 = inlined_call_operand.vmem [shape: f32[2,24], index: 8, kind: input, shape index: {}]
  %s9 = inlined_call_operand.vmem [shape: f32[24,128], index: 9, kind: input, shape index: {}]
  %s10 = inlined_call_operand.vmem [shape: f32[2,128], index: 10, kind: input, shape index: {}]
  %s11 = inlined_call_operand.hbm [shape: f32[8,128], index: 11, kind: output, shape index: {}]
  %s12 = sld [smem:[#allocation0]]
  $region74: #{_fused_forward.1} parent=0
    _
  %s14 = ssub.s32 1, %s12
  %s15 = scalar_select 0, %s14, %s12
  $region1: #{_fused_forward.1} parent=0
    #allocation2 [shape = 'u8[4096]{0}', space=vmem, size = 0x1000, scoped, tag = 'input window, operand 0, single buffered']
    #allocation3 [shape = 's32[1]{0}', space=sflag, size = 0x4, scoped, tag = 'scoped memory for _fused_forward.1']
    #allocation4 [shape = 's32[1]{0}', space=sflag, size = 0x4, scoped, tag = 'scoped memory for _fused_forward.1']
    #allocation5 [shape = 'u8[4096]{0}', space=vmem, size = 0x1000, scoped, tag = 'input window, operand 1, single buffered']
    #allocation6 [shape = 's32[1]{0}', space=sflag, size = 0x4, scoped, tag = 'scoped memory for _fused_forward.1']
    #allocation7 [shape = 'u8[4096]{0}', space=vmem, size = 0x1000, scoped, tag = 'input window, operand 2, single buffered']
    #allocation8 [shape = 'u8[16384]{0}', space=vmem, size = 0x4000, scoped, tag = 'input window, operand 3, single buffered']
    #allocation9 [shape = 's32[1]{0}', space=sflag, size = 0x4, scoped, tag = 'scoped memory for _fused_forward.1']
    #allocation10 [shape = 'u8[8192]{0}', space=vmem, size = 0x2000, scoped, tag = 'input window, operand 5, single buffered']
    #allocation11 [shape = 'u8[4096]{0}', space=vmem, size = 0x1000, scoped, tag = 'output window, operand 0, single buffered']
    %16 = vsyncpa [#allocation3], 0
    %17 = vsyncpa [#allocation6], 0
    %18 = vsyncpa [#allocation9], 0
    %19 = vsyncpa [#allocation4], 0
    // Predicated region
    $region2: #{_fused_forward.1} parent=1 // pred_check
      _
    $region3: #{_fused_forward.1} parent=1 // pred_check_branch
      %21 = sbr.rel (0) target = $region5
    $region4: #{_fused_forward.1} parent=1 // pred_region
      %s23 = ssub.s32 128, 128
      %24 = vsyncadd [#allocation3], %s23
      %s26 = sshll.u32 [#allocation2], 4
      %s27 = int_to_ptr.vmem [resolvable:$true] %s26
      %29 = dma.hbm_to_vmem [thread:$0]  %s0, 128, %s27, [#allocation3]
    $region5: #{_fused_forward.1} parent=1 // pred_fallthru
      _
    // Predicated region
    $region6: #{_fused_forward.1} parent=1 // pred_check
      _
    $region7: #{_fused_forward.1} parent=1 // pred_check_branch
      %31 = sbr.rel (0) target = $region9
    $region8: #{_fused_forward.1} parent=1 // pred_region
      %s33 = ssub.s32 128, 128
      %34 = vsyncadd [#allocation6], %s33
      %s36 = sshll.u32 [#allocation5], 4
      %s37 = int_to_ptr.vmem [resolvable:$true] %s36
      %39 = dma.hbm_to_vmem [thread:$0]  %s1, 128, %s37, [#allocation6]
    $region9: #{_fused_forward.1} parent=1 // pred_fallthru
      _
    // Predicated region
    $region10: #{_fused_forward.1} parent=1 // pred_check
      _
    $region11: #{_fused_forward.1} parent=1 // pred_check_branch
      %41 = sbr.rel (0) target = $region13
    $region12: #{_fused_forward.1} parent=1 // pred_region
      %s43 = ssub.s32 128, 128
      %44 = vsyncadd [#allocation6], %s43
      %s46 = sshll.u32 [#allocation7], 4
      %s47 = int_to_ptr.vmem [resolvable:$true] %s46
      %49 = dma.hbm_to_vmem [thread:$0]  %s2, 128, %s47, [#allocation6]
    $region13: #{_fused_forward.1} parent=1 // pred_fallthru
      _
    // Predicated region
    $region14: #{_fused_forward.1} parent=1 // pred_check
      _
    $region15: #{_fused_forward.1} parent=1 // pred_check_branch
      %51 = sbr.rel (0) target = $region17
    $region16: #{_fused_forward.1} parent=1 // pred_region
      %s53 = ssub.s32 512, 512
      %54 = vsyncadd [#allocation9], %s53
      %s55 = sshll.u32 [#allocation8], 4
      %s56 = int_to_ptr.vmem [resolvable:$true] %s55
      %61 = dma.hbm_to_vmem [thread:$0]  %s3, 512, %s56, [#allocation9], 128, 128, 8
    $region17: #{_fused_forward.1} parent=1 // pred_fallthru
      _
    // Predicated region
    $region18: #{_fused_forward.1} parent=1 // pred_check
      _
    $region19: #{_fused_forward.1} parent=1 // pred_check_branch
      %63 = sbr.rel (0) target = $region21
    $region20: #{_fused_forward.1} parent=1 // pred_region
      _
    $region21: #{_fused_forward.1} parent=1 // pred_fallthru
      _
    // Predicated region
    $region22: #{_fused_forward.1} parent=1 // pred_check
      _
    $region23: #{_fused_forward.1} parent=1 // pred_check_branch
      %65 = sbr.rel (0) target = $region25
    $region24: #{_fused_forward.1} parent=1 // pred_region
      %s67 = ssub.s32 256, 256
      %68 = vsyncadd [#allocation9], %s67
      %s69 = sshll.u32 [#allocation10], 4
      %s70 = int_to_ptr.vmem [resolvable:$true] %s69
      %75 = dma.hbm_to_vmem [thread:$0]  %s5, 256, %s70, [#allocation9], 128, 128, 8
    $region25: #{_fused_forward.1} parent=1 // pred_fallthru
      _
    // Predicated region
    $region26: #{_fused_forward.1} parent=1 // pred_check
      _
    $region27: #{_fused_forward.1} parent=1 // pred_check_branch
      %77 = sbr.rel (0) target = $region29
    $region28: #{_fused_forward.1} parent=1 // pred_region
      _
    $region29: #{_fused_forward.1} parent=1 // pred_fallthru
      _
    // Predicated region
    $region30: #{_fused_forward.1} parent=1 // pred_check
      _
    $region31: #{_fused_forward.1} parent=1 // pred_check_branch
      %79 = sbr.rel (0) target = $region33
    $region32: #{_fused_forward.1} parent=1 // pred_region
      _
    $region33: #{_fused_forward.1} parent=1 // pred_fallthru
      _
    // Predicated region
    $region34: #{_fused_forward.1} parent=1 // pred_check
      _
    $region35: #{_fused_forward.1} parent=1 // pred_check_branch
      %81 = sbr.rel (0) target = $region37
    $region36: #{_fused_forward.1} parent=1 // pred_region
      _
    $region37: #{_fused_forward.1} parent=1 // pred_fallthru
      _
    // Predicated region
    $region38: #{_fused_forward.1} parent=1 // pred_check
      _
    $region39: #{_fused_forward.1} parent=1 // pred_check_branch
      %83 = sbr.rel (0) target = $region41
    $region40: #{_fused_forward.1} parent=1 // pred_region
      _
    $region41: #{_fused_forward.1} parent=1 // pred_fallthru
      _
    // Predicated region
    $region42: #{_fused_forward.1} parent=1 // pred_check
      _
    $region43: #{_fused_forward.1} parent=1 // pred_check_branch
      %85 = sbr.rel (0) target = $region45
    $region44: #{_fused_forward.1} parent=1 // pred_region
      _
    $region45: #{_fused_forward.1} parent=1 // pred_fallthru
      _
    // Predicated region
    $region46: #{_fused_forward.1} parent=1 // pred_check
      _
    $region47: #{_fused_forward.1} parent=1 // pred_check_branch
      %87 = sbr.rel (0) target = $region49
    $region48: #{_fused_forward.1} parent=1 // pred_region
      %88 = dma.done [#allocation3], 128
    $region49: #{_fused_forward.1} parent=1 // pred_fallthru
      _
    // Predicated region
    $region50: #{_fused_forward.1} parent=1 // pred_check
      _
    $region51: #{_fused_forward.1} parent=1 // pred_check_branch
      %90 = sbr.rel (0) target = $region53
    $region52: #{_fused_forward.1} parent=1 // pred_region
      %91 = dma.done [#allocation6], 128
    $region53: #{_fused_forward.1} parent=1 // pred_fallthru
      _
    // Predicated region
    $region54: #{_fused_forward.1} parent=1 // pred_check
      _
    $region55: #{_fused_forward.1} parent=1 // pred_check_branch
      %93 = sbr.rel (0) target = $region57
    $region56: #{_fused_forward.1} parent=1 // pred_region
      %94 = dma.done [#allocation6], 128
    $region57: #{_fused_forward.1} parent=1 // pred_fallthru
      _
    // Predicated region
    $region58: #{_fused_forward.1} parent=1 // pred_check
      _
    $region59: #{_fused_forward.1} parent=1 // pred_check_branch
      %96 = sbr.rel (0) target = $region61
    $region60: #{_fused_forward.1} parent=1 // pred_region
      %97 = dma.done [#allocation9], 512
    $region61: #{_fused_forward.1} parent=1 // pred_fallthru
      _
    // Predicated region
    $region62: #{_fused_forward.1} parent=1 // pred_check
      _
    $region63: #{_fused_forward.1} parent=1 // pred_check_branch
      %99 = sbr.rel (0) target = $region65
    $region64: #{_fused_forward.1} parent=1 // pred_region
      %100 = dma.done [#allocation9], 256
    $region65: #{_fused_forward.1} parent=1 // pred_fallthru
      _
    %v101 = vld [vmem:[#allocation2] sm:$0xff]
    %v102 = vld [vmem:[#allocation8] sm:$0xff]
    %v103 = vld [vmem:[#allocation8 + $0x8] sm:$0xff]
    %v104 = vld [vmem:[#allocation8 + $0x10] sm:$0xff]
    %v105 = vld [vmem:[#allocation8 + $0x18] sm:$0xff]
    %v106 = vld [vmem:[#allocation5] sm:$0xff]
    %v107 = vld [vmem:[%s4] sm:$0xff]
    %v108 = vld [vmem:[%s4 + $0x8] sm:$0xff]
    %v109 = vld [vmem:[%s4 + $0x10] sm:$0xff]
    %v110 = vld [vmem:[%s4 + $0x18] sm:$0xff]
    %v111 = vld [vmem:[%s4 + $0x20] sm:$0xff]
    %v112 = vld [vmem:[%s4 + $0x28] sm:$0xff]
    %vm113 = vcmask 392192
    %v115 = vsel %vm113, %v106, 0
    %117 = vmatprep.subr.mxu0 0.0
    %118 = vmatpush1.msra.mxu0 0.0
    %119 = vmatprep.subr.mxu0 0.0
    %120 = vmatpush1.msra.mxu0 0.0
    %121 = vmatprep.subr.mxu0 0.0
    %122 = vmatpush1.msra.mxu0 0.0
    %123 = vmatprep.subr.mxu0 0.0
    %124 = vmatpush1.msra.mxu0 0.0
    %125 = vmatprep.subr.mxu0 0.0
    %126 = vmatpush1.msra.mxu0 0.0
    %127 = vmatprep.subr.mxu0 0.0
    %128 = vmatpush1.msra.mxu0 0.0
    %129 = vmatprep.subr.mxu0 0.0
    %130 = vmatpush1.msra.mxu0 0.0
    %131 = vmatprep.subr.mxu0 0.0
    %132 = vmatpush1.msra.mxu0 0.0
    %133 = vmatprep.subr.mxu0 0.0
    %134 = vmatpush1.msra.mxu0 0.0
    %135 = vmatprep.subr.mxu0 0.0
    %136 = vmatpush1.msra.mxu0 0.0
    %137 = vmatprep.subr.mxu0 0.0
    %138 = vmatpush1.msra.mxu0 %v112
    %139 = vmatprep.subr.mxu0 0.0
    %140 = vmatpush1.msra.mxu0 %v111
    %141 = vmatprep.subr.mxu0 0.0
    %142 = vmatpush1.msra.mxu0 %v110
    %143 = vmatprep.subr.mxu0 0.0
    %144 = vmatpush1.msra.mxu0 %v109
    %145 = vmatprep.subr.mxu0 0.0
    %146 = vmatpush1.msra.mxu0 %v108
    %147 = vmatprep.subr.mxu0 0.0
    %148 = vmatpush1.msra.mxu0 %v107
    %149 = vmatprep.subr.mxu0 0.0
    %150 = vmatpush2.msra.mxu0 0.0
    %151 = vmatprep.subr.mxu0 0.0
    %152 = vmatpush2.msra.mxu0 0.0
    %153 = vmatprep.subr.mxu0 0.0
    %154 = vmatpush2.msra.mxu0 0.0
    %155 = vmatprep.subr.mxu0 0.0
    %156 = vmatpush2.msra.mxu0 0.0
    %157 = vmatprep.subr.mxu0 0.0
    %158 = vmatpush2.msra.mxu0 0.0
    %159 = vmatprep.subr.mxu0 0.0
    %160 = vmatpush2.msra.mxu0 0.0
    %161 = vmatprep.subr.mxu0 0.0
    %162 = vmatpush2.msra.mxu0 0.0
    %163 = vmatprep.subr.mxu0 0.0
    %164 = vmatpush2.msra.mxu0 0.0
    %165 = vmatprep.subr.mxu0 0.0
    %166 = vmatpush2.msra.mxu0 0.0
    %167 = vmatprep.subr.mxu0 0.0
    %168 = vmatpush2.msra.mxu0 0.0
    %169 = vmatprep.subr.mxu0 0.0
    %170 = vmatpush2.msra.mxu0 0.0
    %171 = vmatprep.subr.mxu0 0.0
    %172 = vmatpush2.msra.mxu0 0.0
    %173 = vmatprep.subr.mxu0 0.0
    %174 = vmatpush2.msra.mxu0 0.0
    %175 = vmatprep.subr.mxu0 0.0
    %176 = vmatpush2.msra.mxu0 0.0
    %177 = vmatprep.subr.mxu0 0.0
    %178 = vmatpush2.msra.mxu0 0.0
    %179 = vmatprep.subr.mxu0 0.0
    %180 = vmatpush2.msra.mxu0 0.0
    %181 = vmatprep.mubr.f32.mxu0 0.0
    %182 = vmatmul.mubr.f32.gmra.mxu0 %v115
    %v183 = vpop.f32.mrf.mxu0
    %v184 = vadd.f32 0.0, %v183
    %v185 = vpop.f32.mrf.mxu0
    %186 = vdwg.mxu0
    %vm187 = vcmask 261120
    %v189 = vsel %vm187, %v101, 0
    %191 = vmatprep.subr.mxu0 0.0
    %192 = vmatpush1.msra.mxu0 0.0
    %193 = vmatprep.subr.mxu0 0.0
    %194 = vmatpush1.msra.mxu0 0.0
    %195 = vmatprep.subr.mxu0 0.0
    %196 = vmatpush1.msra.mxu0 0.0
    %197 = vmatprep.subr.mxu0 0.0
    %198 = vmatpush1.msra.mxu0 0.0
    %199 = vmatprep.subr.mxu0 0.0
    %200 = vmatpush1.msra.mxu0 0.0
    %201 = vmatprep.subr.mxu0 0.0
    %202 = vmatpush1.msra.mxu0 0.0
    %203 = vmatprep.subr.mxu0 0.0
    %204 = vmatpush1.msra.mxu0 0.0
    %205 = vmatprep.subr.mxu0 0.0
    %206 = vmatpush1.msra.mxu0 0.0
    %207 = vmatprep.subr.mxu0 0.0
    %208 = vmatpush1.msra.mxu0 0.0
    %209 = vmatprep.subr.mxu0 0.0
    %210 = vmatpush1.msra.mxu0 0.0
    %211 = vmatprep.subr.mxu0 0.0
    %212 = vmatpush1.msra.mxu0 0.0
    %213 = vmatprep.subr.mxu0 0.0
    %214 = vmatpush1.msra.mxu0 0.0
    %215 = vmatprep.subr.mxu0 0.0
    %216 = vmatpush1.msra.mxu0 %v105
    %217 = vmatprep.subr.mxu0 0.0
    %218 = vmatpush1.msra.mxu0 %v104
    %219 = vmatprep.subr.mxu0 0.0
    %220 = vmatpush1.msra.mxu0 %v103
    %221 = vmatprep.subr.mxu0 0.0
    %222 = vmatpush1.msra.mxu0 %v102
    %223 = vmatprep.subr.mxu0 0.0
    %224 = vmatpush2.msra.mxu0 0.0
    %225 = vmatprep.subr.mxu0 0.0
    %226 = vmatpush2.msra.mxu0 0.0
    %227 = vmatprep.subr.mxu0 0.0
    %228 = vmatpush2.msra.mxu0 0.0
    %229 = vmatprep.subr.mxu0 0.0
    %230 = vmatpush2.msra.mxu0 0.0
    %231 = vmatprep.subr.mxu0 0.0
    %232 = vmatpush2.msra.mxu0 0.0
    %233 = vmatprep.subr.mxu0 0.0
    %234 = vmatpush2.msra.mxu0 0.0
    %235 = vmatprep.subr.mxu0 0.0
    %236 = vmatpush2.msra.mxu0 0.0
    %237 = vmatprep.subr.mxu0 0.0
    %238 = vmatpush2.msra.mxu0 0.0
    %239 = vmatprep.subr.mxu0 0.0
    %240 = vmatpush2.msra.mxu0 0.0
    %241 = vmatprep.subr.mxu0 0.0
    %242 = vmatpush2.msra.mxu0 0.0
    %243 = vmatprep.subr.mxu0 0.0
    %244 = vmatpush2.msra.mxu0 0.0
    %245 = vmatprep.subr.mxu0 0.0
    %246 = vmatpush2.msra.mxu0 0.0
    %247 = vmatprep.subr.mxu0 0.0
    %248 = vmatpush2.msra.mxu0 0.0
    %249 = vmatprep.subr.mxu0 0.0
    %250 = vmatpush2.msra.mxu0 0.0
    %251 = vmatprep.subr.mxu0 0.0
    %252 = vmatpush2.msra.mxu0 0.0
    %253 = vmatprep.subr.mxu0 0.0
    %254 = vmatpush2.msra.mxu0 0.0
    %255 = vmatprep.mubr.f32.mxu0 0.0
    %256 = vmatmul.mubr.f32.gmra.mxu0 %v189
    %v257 = vpop.f32.mrf.mxu0
    %v258 = vadd.f32 %v184, %v257
    %v259 = vpop.f32.mrf.mxu0
    %260 = vdwg.mxu0
    %v261 = vld [vmem:[#allocation7] sm:$0xff]
    %v262 = vld [vmem:[#allocation10] sm:$0xff]
    %v263 = vld [vmem:[#allocation10 + $0x8] sm:$0xff]
    %vm264 = vcmask 130048
    %v266 = vsel %vm264, %v261, 0
    %268 = vmatprep.subr.mxu0 0.0
    %269 = vmatpush1.msra.mxu0 0.0
    %270 = vmatprep.subr.mxu0 0.0
    %271 = vmatpush1.msra.mxu0 0.0
    %272 = vmatprep.subr.mxu0 0.0
    %273 = vmatpush1.msra.mxu0 0.0
    %274 = vmatprep.subr.mxu0 0.0
    %275 = vmatpush1.msra.mxu0 0.0
    %276 = vmatprep.subr.mxu0 0.0
    %277 = vmatpush1.msra.mxu0 0.0
    %278 = vmatprep.subr.mxu0 0.0
    %279 = vmatpush1.msra.mxu0 0.0
    %280 = vmatprep.subr.mxu0 0.0
    %281 = vmatpush1.msra.mxu0 0.0
    %282 = vmatprep.subr.mxu0 0.0
    %283 = vmatpush1.msra.mxu0 0.0
    %284 = vmatprep.subr.mxu0 0.0
    %285 = vmatpush1.msra.mxu0 0.0
    %286 = vmatprep.subr.mxu0 0.0
    %287 = vmatpush1.msra.mxu0 0.0
    %288 = vmatprep.subr.mxu0 0.0
    %289 = vmatpush1.msra.mxu0 0.0
    %290 = vmatprep.subr.mxu0 0.0
    %291 = vmatpush1.msra.mxu0 0.0
    %292 = vmatprep.subr.mxu0 0.0
    %293 = vmatpush1.msra.mxu0 0.0
    %294 = vmatprep.subr.mxu0 0.0
    %295 = vmatpush1.msra.mxu0 0.0
    %296 = vmatprep.subr.mxu0 0.0
    %297 = vmatpush1.msra.mxu0 %v263
    %298 = vmatprep.subr.mxu0 0.0
    %299 = vmatpush1.msra.mxu0 %v262
    %300 = vmatprep.subr.mxu0 0.0
    %301 = vmatpush2.msra.mxu0 0.0
    %302 = vmatprep.subr.mxu0 0.0
    %303 = vmatpush2.msra.mxu0 0.0
    %304 = vmatprep.subr.mxu0 0.0
    %305 = vmatpush2.msra.mxu0 0.0
    %306 = vmatprep.subr.mxu0 0.0
    %307 = vmatpush2.msra.mxu0 0.0
    %308 = vmatprep.subr.mxu0 0.0
    %309 = vmatpush2.msra.mxu0 0.0
    %310 = vmatprep.subr.mxu0 0.0
    %311 = vmatpush2.msra.mxu0 0.0
    %312 = vmatprep.subr.mxu0 0.0
    %313 = vmatpush2.msra.mxu0 0.0
    %314 = vmatprep.subr.mxu0 0.0
    %315 = vmatpush2.msra.mxu0 0.0
    %316 = vmatprep.subr.mxu0 0.0
    %317 = vmatpush2.msra.mxu0 0.0
    %318 = vmatprep.subr.mxu0 0.0
    %319 = vmatpush2.msra.mxu0 0.0
    %320 = vmatprep.subr.mxu0 0.0
    %321 = vmatpush2.msra.mxu0 0.0
    %322 = vmatprep.subr.mxu0 0.0
    %323 = vmatpush2.msra.mxu0 0.0
    %324 = vmatprep.subr.mxu0 0.0
    %325 = vmatpush2.msra.mxu0 0.0
    %326 = vmatprep.subr.mxu0 0.0
    %327 = vmatpush2.msra.mxu0 0.0
    %328 = vmatprep.subr.mxu0 0.0
    %329 = vmatpush2.msra.mxu0 0.0
    %330 = vmatprep.subr.mxu0 0.0
    %331 = vmatpush2.msra.mxu0 0.0
    %332 = vmatprep.mubr.f32.mxu0 0.0
    %333 = vmatmul.mubr.f32.gmra.mxu0 %v266
    %v334 = vpop.f32.mrf.mxu0
    %v335 = vadd.f32 0.0, %v334
    %v336 = vpop.f32.mrf.mxu0
    %337 = vdwg.mxu0
    %v338 = vadd.f32 %v258, %v335
    %v339 = vsel %vm113, %v338, 0.0
    %v340 = vrot.slane %v339, 4
    %v341 = vadd.f32 %v339, %v340
    %v342 = vrot.slane %v341, 2
    %v343 = vadd.f32 %v341, %v342
    %v344 = vrot.slane %v343, 1
    %v345 = vadd.f32 %v343, %v344
    %v346 = vrcp.pop 8.0
    %v347 = vmul.f32 %v345, %v346
    %v348 = vsub.f32 %v338, %v347
    %v349 = vmul.f32 %v348, %v348
    %v350 = vsel %vm113, %v349, 0.0
    %v351 = vrot.slane %v350, 4
    %v352 = vadd.f32 %v350, %v351
    %v353 = vrot.slane %v352, 2
    %v354 = vadd.f32 %v352, %v353
    %v355 = vrot.slane %v354, 1
    %v356 = vadd.f32 %v354, %v355
    %v357 = vmul.f32 %v356, %v346
    %v358 = vadd.f32 %v357, 1e-05
    %v359 = vrsqrt.pop %v358
    %v360 = vmul.f32 %v348, %v359
    %v361 = vld [vmem:[%s6] sm:$0x3]
    %v362 = vlaneseq
    %v363 = vshrl.u32 %v362, 7
    %v364 = vsub.s32 0, %v363
    %v365 = vrot.slane %v361, %v364
    %v366 = vmul.f32 %v360, %v365
    %v367 = vlaneseq
    %v368 = vshrl.u32 %v367, 7
    %v369 = vsub.s32 1, %v368
    %v370 = vrot.slane %v361, %v369
    %v371 = vadd.f32 %v366, %v370
    %v372 = vtanh.pop %v371
    %v373 = vld [vmem:[%s7] sm:$0xff]
    %v374 = vld [vmem:[%s7 + $0x8] sm:$0xff]
    %v375 = vld [vmem:[%s7 + $0x10] sm:$0xff]
    %v376 = vld [vmem:[%s7 + $0x18] sm:$0xff]
    %v377 = vld [vmem:[%s7 + $0x20] sm:$0xff]
    %v378 = vld [vmem:[%s7 + $0x28] sm:$0xff]
    %v380 = vsel %vm113, %v372, 0
    %382 = vmatprep.subr.mxu0 0.0
    %383 = vmatpush1.msra.mxu0 0.0
    %384 = vmatprep.subr.mxu0 0.0
    %385 = vmatpush1.msra.mxu0 0.0
    %386 = vmatprep.subr.mxu0 0.0
    %387 = vmatpush1.msra.mxu0 0.0
    %388 = vmatprep.subr.mxu0 0.0
    %389 = vmatpush1.msra.mxu0 0.0
    %390 = vmatprep.subr.mxu0 0.0
    %391 = vmatpush1.msra.mxu0 0.0
    %392 = vmatprep.subr.mxu0 0.0
    %393 = vmatpush1.msra.mxu0 0.0
    %394 = vmatprep.subr.mxu0 0.0
    %395 = vmatpush1.msra.mxu0 0.0
    %396 = vmatprep.subr.mxu0 0.0
    %397 = vmatpush1.msra.mxu0 0.0
    %398 = vmatprep.subr.mxu0 0.0
    %399 = vmatpush1.msra.mxu0 0.0
    %400 = vmatprep.subr.mxu0 0.0
    %401 = vmatpush1.msra.mxu0 0.0
    %402 = vmatprep.subr.mxu0 0.0
    %403 = vmatpush1.msra.mxu0 %v378
    %404 = vmatprep.subr.mxu0 0.0
    %405 = vmatpush1.msra.mxu0 %v377
    %406 = vmatprep.subr.mxu0 0.0
    %407 = vmatpush1.msra.mxu0 %v376
    %408 = vmatprep.subr.mxu0 0.0
    %409 = vmatpush1.msra.mxu0 %v375
    %410 = vmatprep.subr.mxu0 0.0
    %411 = vmatpush1.msra.mxu0 %v374
    %412 = vmatprep.subr.mxu0 0.0
    %413 = vmatpush1.msra.mxu0 %v373
    %414 = vmatprep.subr.mxu0 0.0
    %415 = vmatpush2.msra.mxu0 0.0
    %416 = vmatprep.subr.mxu0 0.0
    %417 = vmatpush2.msra.mxu0 0.0
    %418 = vmatprep.subr.mxu0 0.0
    %419 = vmatpush2.msra.mxu0 0.0
    %420 = vmatprep.subr.mxu0 0.0
    %421 = vmatpush2.msra.mxu0 0.0
    %422 = vmatprep.subr.mxu0 0.0
    %423 = vmatpush2.msra.mxu0 0.0
    %424 = vmatprep.subr.mxu0 0.0
    %425 = vmatpush2.msra.mxu0 0.0
    %426 = vmatprep.subr.mxu0 0.0
    %427 = vmatpush2.msra.mxu0 0.0
    %428 = vmatprep.subr.mxu0 0.0
    %429 = vmatpush2.msra.mxu0 0.0
    %430 = vmatprep.subr.mxu0 0.0
    %431 = vmatpush2.msra.mxu0 0.0
    %432 = vmatprep.subr.mxu0 0.0
    %433 = vmatpush2.msra.mxu0 0.0
    %434 = vmatprep.subr.mxu0 0.0
    %435 = vmatpush2.msra.mxu0 0.0
    %436 = vmatprep.subr.mxu0 0.0
    %437 = vmatpush2.msra.mxu0 0.0
    %438 = vmatprep.subr.mxu0 0.0
    %439 = vmatpush2.msra.mxu0 0.0
    %440 = vmatprep.subr.mxu0 0.0
    %441 = vmatpush2.msra.mxu0 0.0
    %442 = vmatprep.subr.mxu0 0.0
    %443 = vmatpush2.msra.mxu0 0.0
    %444 = vmatprep.subr.mxu0 0.0
    %445 = vmatpush2.msra.mxu0 0.0
    %446 = vmatprep.mubr.f32.mxu0 0.0
    %447 = vmatmul.mubr.f32.gmra.mxu0 %v380
    %v448 = vpop.f32.mrf.mxu0
    %v449 = vadd.f32 0.0, %v448
    %v450 = vpop.f32.mrf.mxu0
    %451 = vdwg.mxu0
    %vm452 = vcmask 195584
    %v453 = vsel %vm452, %v449, 0.0
    %v454 = vrot.slane %v453, 4
    %v455 = vadd.f32 %v453, %v454
    %v456 = vrot.slane %v455, 2
    %v457 = vadd.f32 %v455, %v456
    %v458 = vrot.slane %v457, 1
    %v459 = vadd.f32 %v457, %v458
    %v460 = vmul.f32 %v459, %v346
    %v461 = vsub.f32 %v449, %v460
    %v462 = vmul.f32 %v461, %v461
    %v463 = vsel %vm452, %v462, 0.0
    %v464 = vrot.slane %v463, 4
    %v465 = vadd.f32 %v463, %v464
    %v466 = vrot.slane %v465, 2
    %v467 = vadd.f32 %v465, %v466
    %v468 = vrot.slane %v467, 1
    %v469 = vadd.f32 %v467, %v468
    %v470 = vmul.f32 %v469, %v346
    %v471 = vadd.f32 %v470, 1e-05
    %v472 = vrsqrt.pop %v471
    %v473 = vmul.f32 %v461, %v472
    %v474 = vld [vmem:[%s8] sm:$0x3]
    %v475 = vlaneseq
    %v476 = vshrl.u32 %v475, 7
    %v477 = vsub.s32 0, %v476
    %v478 = vrot.slane %v474, %v477
    %v479 = vmul.f32 %v473, %v478
    %v480 = vlaneseq
    %v481 = vshrl.u32 %v480, 7
    %v482 = vsub.s32 1, %v481
    %v483 = vrot.slane %v474, %v482
    %v484 = vadd.f32 %v479, %v483
    %v485 = vtanh.pop %v484
    %v486 = vld [vmem:[%s9] sm:$0xff]
    %v487 = vld [vmem:[%s9 + $0x8] sm:$0xff]
    %v488 = vld [vmem:[%s9 + $0x10] sm:$0xff]
    %v490 = vsel %vm452, %v485, 0
    %492 = vmatprep.subr.mxu0 0.0
    %493 = vmatpush1.msra.mxu0 0.0
    %494 = vmatprep.subr.mxu0 0.0
    %495 = vmatpush1.msra.mxu0 0.0
    %496 = vmatprep.subr.mxu0 0.0
    %497 = vmatpush1.msra.mxu0 0.0
    %498 = vmatprep.subr.mxu0 0.0
    %499 = vmatpush1.msra.mxu0 0.0
    %500 = vmatprep.subr.mxu0 0.0
    %501 = vmatpush1.msra.mxu0 0.0
    %502 = vmatprep.subr.mxu0 0.0
    %503 = vmatpush1.msra.mxu0 0.0
    %504 = vmatprep.subr.mxu0 0.0
    %505 = vmatpush1.msra.mxu0 0.0
    %506 = vmatprep.subr.mxu0 0.0
    %507 = vmatpush1.msra.mxu0 0.0
    %508 = vmatprep.subr.mxu0 0.0
    %509 = vmatpush1.msra.mxu0 0.0
    %510 = vmatprep.subr.mxu0 0.0
    %511 = vmatpush1.msra.mxu0 0.0
    %512 = vmatprep.subr.mxu0 0.0
    %513 = vmatpush1.msra.mxu0 0.0
    %514 = vmatprep.subr.mxu0 0.0
    %515 = vmatpush1.msra.mxu0 0.0
    %516 = vmatprep.subr.mxu0 0.0
    %517 = vmatpush1.msra.mxu0 0.0
    %518 = vmatprep.subr.mxu0 0.0
    %519 = vmatpush1.msra.mxu0 %v488
    %520 = vmatprep.subr.mxu0 0.0
    %521 = vmatpush1.msra.mxu0 %v487
    %522 = vmatprep.subr.mxu0 0.0
    %523 = vmatpush1.msra.mxu0 %v486
    %524 = vmatprep.subr.mxu0 0.0
    %525 = vmatpush2.msra.mxu0 0.0
    %526 = vmatprep.subr.mxu0 0.0
    %527 = vmatpush2.msra.mxu0 0.0
    %528 = vmatprep.subr.mxu0 0.0
    %529 = vmatpush2.msra.mxu0 0.0
    %530 = vmatprep.subr.mxu0 0.0
    %531 = vmatpush2.msra.mxu0 0.0
    %532 = vmatprep.subr.mxu0 0.0
    %533 = vmatpush2.msra.mxu0 0.0
    %534 = vmatprep.subr.mxu0 0.0
    %535 = vmatpush2.msra.mxu0 0.0
    %536 = vmatprep.subr.mxu0 0.0
    %537 = vmatpush2.msra.mxu0 0.0
    %538 = vmatprep.subr.mxu0 0.0
    %539 = vmatpush2.msra.mxu0 0.0
    %540 = vmatprep.subr.mxu0 0.0
    %541 = vmatpush2.msra.mxu0 0.0
    %542 = vmatprep.subr.mxu0 0.0
    %543 = vmatpush2.msra.mxu0 0.0
    %544 = vmatprep.subr.mxu0 0.0
    %545 = vmatpush2.msra.mxu0 0.0
    %546 = vmatprep.subr.mxu0 0.0
    %547 = vmatpush2.msra.mxu0 0.0
    %548 = vmatprep.subr.mxu0 0.0
    %549 = vmatpush2.msra.mxu0 0.0
    %550 = vmatprep.subr.mxu0 0.0
    %551 = vmatpush2.msra.mxu0 0.0
    %552 = vmatprep.subr.mxu0 0.0
    %553 = vmatpush2.msra.mxu0 0.0
    %554 = vmatprep.subr.mxu0 0.0
    %555 = vmatpush2.msra.mxu0 0.0
    %556 = vmatprep.mubr.f32.mxu0 0.0
    %557 = vmatmul.mubr.f32.gmra.mxu0 %v490
    %v558 = vpop.f32.mrf.mxu0
    %v559 = vadd.f32 0.0, %v558
    %v560 = vpop.f32.mrf.mxu0
    %561 = vdwg.mxu0
    %v562 = vrot.slane %v559, 4
    %v563 = vadd.f32 %v559, %v562
    %v564 = vrot.slane %v563, 2
    %v565 = vadd.f32 %v563, %v564
    %v566 = vrot.slane %v565, 1
    %v567 = vadd.f32 %v565, %v566
    %v568 = vmul.f32 %v567, %v346
    %v569 = vsub.f32 %v559, %v568
    %v570 = vmul.f32 %v569, %v569
    %v571 = vrot.slane %v570, 4
    %v572 = vadd.f32 %v570, %v571
    %v573 = vrot.slane %v572, 2
    %v574 = vadd.f32 %v572, %v573
    %v575 = vrot.slane %v574, 1
    %v576 = vadd.f32 %v574, %v575
    %v577 = vmul.f32 %v576, %v346
    %v578 = vadd.f32 %v577, 1e-05
    %v579 = vrsqrt.pop %v578
    %v580 = vmul.f32 %v569, %v579
    %v581 = vld [vmem:[%s10] sm:$0x3]
    %v582 = vlaneseq
    %v583 = vshrl.u32 %v582, 7
    %v584 = vsub.s32 0, %v583
    %v585 = vrot.slane %v581, %v584
    %v586 = vmul.f32 %v580, %v585
    %v587 = vlaneseq
    %v588 = vshrl.u32 %v587, 7
    %v589 = vsub.s32 1, %v588
    %v590 = vrot.slane %v581, %v589
    %v591 = vadd.f32 %v586, %v590
    %v592 = vtanh.pop %v591
    %593 = vst [vmem:[#allocation11] sm:$0xff] %v592
    // Predicated region
    $region66: #{_fused_forward.1} parent=1 // pred_check
      _
    $region67: #{_fused_forward.1} parent=1 // pred_check_branch
      %595 = sbr.rel (0) target = $region69
    $region68: #{_fused_forward.1} parent=1 // pred_region
      %s597 = ssub.s32 128, 128
      %598 = vsyncadd [#allocation4], %s597
      %s600 = sshll.u32 [#allocation11], 4
      %s601 = int_to_ptr.vmem [resolvable:$true] %s600
      %603 = dma.vmem_to_hbm [thread:$0]  %s601, 128, %s11, [#allocation4]
    $region69: #{_fused_forward.1} parent=1 // pred_fallthru
      _
    // Predicated region
    $region70: #{_fused_forward.1} parent=1 // pred_check
      _
    $region71: #{_fused_forward.1} parent=1 // pred_check_branch
      %605 = sbr.rel (0) target = $region73
    $region72: #{_fused_forward.1} parent=1 // pred_region
      %606 = dma.done [#allocation4], 128
    $region73: #{_fused_forward.1} parent=1 // pred_fallthru
      _
    %607 = vsyncpa [#allocation3], 1
    %608 = vsyncpa [#allocation6], 1
    %609 = vsyncpa [#allocation9], 1
    %610 = vsyncpa [#allocation4], 1

</llo_original>
